<compile_context>
chip_gen: v7x
topology: tpu7x:2x2x1
jax: 0.10.0
libtpu: 0.0.40
codegen_flags: <defaults>
</compile_context>

<pallas_src>
import math
from functools import partial
from typing import Dict, Tuple

import jax
import jax.numpy as jnp
from jax.experimental import pallas as pl
from jax.experimental.pallas import tpu as pltpu


# ---------------------------------------------------------------------------
# helpers
# ---------------------------------------------------------------------------

def _round_up(x: int, m: int) -> int:
    return ((x + m - 1) // m) * m


def _pick_tm(n: int) -> int:
    # Batch tile: multiple of the 8-sublane minimum, capped at 128 so the
    # double-buffered f32 recons tile (128*1024*4B per buffer) stays far below
    # the v7x 64 MiB physical / 32 MiB default-scoped VMEM budget.
    return min(128, _round_up(max(n, 1), 8))


# ---------------------------------------------------------------------------
# Pallas kernels
# ---------------------------------------------------------------------------

def _fwd_loss_kernel(x_ref, eps_ref, w_enc_ref, b_enc_ref, w_dec_ref, b_dec_ref,
                     recons_ref, stats_ref, loss_ref, *, n_valid, d_lat):
    """Fused encode -> reparameterize -> decode -> loss partials.

    x_ref:     (TM, Din)   bf16 flattened image tile
    eps_ref:   (TM, L)     f32 standard-normal noise
    w_enc_ref: (Din, 2L)   bf16 fused [W_mu | W_logvar]
    b_enc_ref: (1, 2L)     f32
    w_dec_ref: (L, Din)    bf16
    b_dec_ref: (1, Din)    f32
    recons_ref:(TM, Din)   f32
    stats_ref: (TM, 2L)    f32 packed [mu | logvar]  (lane-dense, 2L = 128)
    loss_ref:  (8, 128)    f32 resident accumulator: [0,0]=SSE, [0,1]=KL-sum
    """
    i = pl.program_id(0)
    tm = x_ref.shape[0]

    x_bf = x_ref[...]                                   # bf16 MXU operand

    # Single lane-dense encoder matmul for [mu | logvar].
    stats = jnp.dot(x_bf, w_enc_ref[...],
                    preferred_element_type=jnp.float32) + b_enc_ref[...]
    mu = stats[:, :d_lat]
    logvar = stats[:, d_lat:]

    # Reparameterization in f32 (VPU/EUP path). var = std*std reuses the EUP exp.
    std = jnp.exp(0.5 * logvar)
    var = std * std
    z = mu + std * eps_ref[...]

    # Decoder matmul: bf16 operands, f32 accumulation.
    recons = jnp.dot(z.astype(jnp.bfloat16), w_dec_ref[...],
                     preferred_element_type=jnp.float32) + b_dec_ref[...]

    recons_ref[...] = recons
    stats_ref[...] = stats

    # ---- fused loss partials (mask rows that come from batch padding) ----
    rows = jax.lax.broadcasted_iota(jnp.int32, (tm, 128), 0) + i * tm
    valid = (rows < n_valid).astype(jnp.float32)[:, :1]          # (TM, 1)

    diff = recons - x_bf.astype(jnp.float32)
    sse = jnp.sum(diff * diff * valid)                           # scalar
    kl_rows = jnp.sum(1.0 + logvar - mu * mu - var,
                      axis=-1, keepdims=True)                    # (TM, 1)
    kls = jnp.sum(kl_rows * valid)                               # scalar

    lane = jax.lax.broadcasted_iota(jnp.int32, loss_ref.shape, 1)
    contrib = jnp.where(lane == 0, sse, 0.0) + jnp.where(lane == 1, kls, 0.0)

    @pl.when(i == 0)
    def _init():
        loss_ref[...] = jnp.zeros_like(loss_ref)

    loss_ref[...] += contrib


def _encode_kernel(x_ref, w_enc_ref, b_enc_ref, stats_ref):
    """Encode only: (TM, Din) bf16 -> packed (TM, 2L) f32 [mu | logvar]."""
    stats_ref[...] = (
        jnp.dot(x_ref[...], w_enc_ref[...], preferred_element_type=jnp.float32)
        + b_enc_ref[...]
    )


def _decode_kernel(z_ref, w_dec_ref, b_dec_ref, out_ref):
    """Decode only (used by sample()): (TM, L) bf16 -> (TM, Din) f32."""
    out_ref[...] = (
        jnp.dot(z_ref[...], w_dec_ref[...], preferred_element_type=jnp.float32)
        + b_dec_ref[...]
    )


def _loss_kernel(img_ref, rec_ref, mu_ref, lv_ref, out_ref, *, n_valid):
    """Standalone tiled loss reduction (interface parity with loss_function)."""
    i = pl.program_id(0)
    tm = img_ref.shape[0]
    rows = jax.lax.broadcasted_iota(jnp.int32, (tm, 128), 0) + i * tm
    valid = (rows < n_valid).astype(jnp.float32)[:, :1]

    diff = rec_ref[...] - img_ref[...]
    sse = jnp.sum(diff * diff * valid)
    mu = mu_ref[...]
    lv = lv_ref[...]
    kl_rows = jnp.sum(1.0 + lv - mu * mu - jnp.exp(lv), axis=-1, keepdims=True)
    kls = jnp.sum(kl_rows * valid)

    lane = jax.lax.broadcasted_iota(jnp.int32, out_ref.shape, 1)
    contrib = jnp.where(lane == 0, sse, 0.0) + jnp.where(lane == 1, kls, 0.0)

    @pl.when(i == 0)
    def _init():
        out_ref[...] = jnp.zeros_like(out_ref)

    out_ref[...] += contrib


# ---------------------------------------------------------------------------
# jitted wrappers (pad / cast / pallas_call plumbing fused under jit)
# ---------------------------------------------------------------------------

@jax.jit
def _forward_and_loss(params, img, eps):
    w_enc, b_enc, w_dec, b_dec = params
    n = img.shape[0]
    d_lat, d_in = w_dec.shape
    d2 = 2 * d_lat

    x = img.reshape(n, d_in).astype(jnp.bfloat16)
    tm = _pick_tm(n)
    n_pad = _round_up(n, tm)
    x_p = jnp.pad(x, ((0, n_pad - n), (0, 0)))
    eps_p = jnp.pad(eps.astype(jnp.float32), ((0, n_pad - n), (0, 0)))

    recons_p, stats_p, loss_parts = pl.pallas_call(
        partial(_fwd_loss_kernel, n_valid=n, d_lat=d_lat),
        out_shape=(
            jax.ShapeDtypeStruct((n_pad, d_in), jnp.float32),
            jax.ShapeDtypeStruct((n_pad, d2), jnp.float32),
            jax.ShapeDtypeStruct((8, 128), jnp.float32),
        ),
        grid_spec=pltpu.PrefetchScalarGridSpec(
            num_scalar_prefetch=0,
            grid=(n_pad // tm,),
            in_specs=[
                pl.BlockSpec((tm, d_in), lambda i: (i, 0)),      # x tile
                pl.BlockSpec((tm, d_lat), lambda i: (i, 0)),     # eps tile
                pl.BlockSpec((d_in, d2), lambda i: (0, 0)),      # fused enc W
                pl.BlockSpec((1, d2), lambda i: (0, 0)),
                pl.BlockSpec((d_lat, d_in), lambda i: (0, 0)),   # dec W
                pl.BlockSpec((1, d_in), lambda i: (0, 0)),
            ],
            out_specs=(
                pl.BlockSpec((tm, d_in), lambda i: (i, 0)),      # recons
                pl.BlockSpec((tm, d2), lambda i: (i, 0)),        # [mu|logvar]
                pl.BlockSpec((8, 128), lambda i: (0, 0)),        # loss partials
            ),
        ),
        compiler_params=pltpu.CompilerParams(
            # loss accumulator is resident across batch tiles -> arbitrary
            dimension_semantics=("arbitrary",),
        ),
    )(x_p, eps_p, w_enc, b_enc, w_dec, b_dec)

    recons = recons_p[:n].reshape(img.shape)
    mu = stats_p[:n, :d_lat]
    logvar = stats_p[:n, d_lat:]
    loss = loss_parts[0, 0] / (n * d_in) - 0.5 * loss_parts[0, 1] / n
    return recons, mu, logvar, loss


@jax.jit
def _encode_fn(params, img):
    w_enc, b_enc, _, _ = params
    n = img.shape[0]
    d_in, d2 = w_enc.shape
    d_lat = d2 // 2

    x = img.reshape(n, d_in).astype(jnp.bfloat16)
    tm = _pick_tm(n)
    n_pad = _round_up(n, tm)
    x_p = jnp.pad(x, ((0, n_pad - n), (0, 0)))

    stats = pl.pallas_call(
        _encode_kernel,
        out_shape=jax.ShapeDtypeStruct((n_pad, d2), jnp.float32),
        grid_spec=pltpu.PrefetchScalarGridSpec(
            num_scalar_prefetch=0,
            grid=(n_pad // tm,),
            in_specs=[
                pl.BlockSpec((tm, d_in), lambda i: (i, 0)),
                pl.BlockSpec((d_in, d2), lambda i: (0, 0)),
                pl.BlockSpec((1, d2), lambda i: (0, 0)),
            ],
            out_specs=pl.BlockSpec((tm, d2), lambda i: (i, 0)),
        ),
        compiler_params=pltpu.CompilerParams(
            dimension_semantics=("parallel",),
        ),
    )(x_p, w_enc, b_enc)

    return stats[:n, :d_lat], stats[:n, d_lat:]


@jax.jit
def _decode_fn(params, z):
    _, _, w_dec, b_dec = params
    n = z.shape[0]
    d_lat, d_in = w_dec.shape

    z_flat = z.reshape(n, d_lat).astype(jnp.bfloat16)
    tm = _pick_tm(n)
    n_pad = _round_up(n, tm)
    z_p = jnp.pad(z_flat, ((0, n_pad - n), (0, 0)))

    out = pl.pallas_call(
        _decode_kernel,
        out_shape=jax.ShapeDtypeStruct((n_pad, d_in), jnp.float32),
        grid_spec=pltpu.PrefetchScalarGridSpec(
            num_scalar_prefetch=0,
            grid=(n_pad // tm,),
            in_specs=[
                pl.BlockSpec((tm, d_lat), lambda i: (i, 0)),
                pl.BlockSpec((d_lat, d_in), lambda i: (0, 0)),
                pl.BlockSpec((1, d_in), lambda i: (0, 0)),
            ],
            out_specs=pl.BlockSpec((tm, d_in), lambda i: (i, 0)),
        ),
        compiler_params=pltpu.CompilerParams(
            dimension_semantics=("parallel",),
        ),
    )(z_p, w_dec, b_dec)

    return out[:n]


@jax.jit
def _loss_fn(img, recons, mu, logvar):
    n = img.shape[0]
    img_f = img.reshape(n, -1).astype(jnp.float32)
    rec_f = recons.reshape(n, -1).astype(jnp.float32)
    mu_f = mu.reshape(n, -1).astype(jnp.float32)
    lv_f = logvar.reshape(n, -1).astype(jnp.float32)
    d_in = img_f.shape[1]
    d_lat = mu_f.shape[1]

    tm = _pick_tm(n)
    n_pad = _round_up(n, tm)
    pad = ((0, n_pad - n), (0, 0))
    img_p, rec_p = jnp.pad(img_f, pad), jnp.pad(rec_f, pad)
    mu_p, lv_p = jnp.pad(mu_f, pad), jnp.pad(lv_f, pad)

    parts = pl.pallas_call(
        partial(_loss_kernel, n_valid=n),
        out_shape=jax.ShapeDtypeStruct((8, 128), jnp.float32),
        grid_spec=pltpu.PrefetchScalarGridSpec(
            num_scalar_prefetch=0,
            grid=(n_pad // tm,),
            in_specs=[
                pl.BlockSpec((tm, d_in), lambda i: (i, 0)),
                pl.BlockSpec((tm, d_in), lambda i: (i, 0)),
                pl.BlockSpec((tm, d_lat), lambda i: (i, 0)),
                pl.BlockSpec((tm, d_lat), lambda i: (i, 0)),
            ],
            out_specs=pl.BlockSpec((8, 128), lambda i: (0, 0)),
        ),
        compiler_params=pltpu.CompilerParams(
            dimension_semantics=("arbitrary",),
        ),
    )(img_p, rec_p, mu_p, lv_p)

    return parts[0, 0] / (n * d_in) - 0.5 * parts[0, 1] / n


# ---------------------------------------------------------------------------
# BaseVAE realization
# ---------------------------------------------------------------------------

class BaseVAEPallas:
    """JAX/Pallas realization of the BaseVAE interface (linear VAE)."""

    def __init__(self, img_shape=(4, 16, 16), latent_dims=(4, 4, 4)):
        self.img_shape = tuple(img_shape)        # (C, H, W)
        self.latent_dims = tuple(latent_dims)    # (Cl, Hl, Wl)
        self.d_in = int(math.prod(self.img_shape))
        self.d_lat = int(math.prod(self.latent_dims))

        # Deterministic synthetic parameters; weights stored bf16 (MXU operands).
        k1, k2, k3 = jax.random.split(jax.random.PRNGKey(42), 3)
        scale = 0.02
        w_mu = scale * jax.random.normal(k1, (self.d_in, self.d_lat), jnp.float32)
        w_lv = scale * jax.random.normal(k2, (self.d_in, self.d_lat), jnp.float32)
        self.w_enc = jnp.concatenate([w_mu, w_lv], axis=1).astype(jnp.bfloat16)
        self.b_enc = jnp.zeros((1, 2 * self.d_lat), jnp.float32)
        self.w_dec = (scale * jax.random.normal(
            k3, (self.d_lat, self.d_in), jnp.float32)).astype(jnp.bfloat16)
        self.b_dec = jnp.zeros((1, self.d_in), jnp.float32)
        self.params = (self.w_enc, self.b_enc, self.w_dec, self.b_dec)

    # ----- forward: fused encode -> reparameterize -> decode -> loss partials
    def forward(self, img: jnp.ndarray, key) -> Tuple[jnp.ndarray, Dict[str, jnp.ndarray]]:
        n = img.shape[0]
        eps = jax.random.normal(key, (n, self.d_lat), jnp.float32)
        recons, mu, logvar, loss = _forward_and_loss(
            self.params, img.astype(jnp.float32), eps)
        return recons, {"mu": mu, "logvar": logvar, "loss": loss}

    # ----- encode -> (mu, logvar) via dedicated encoder kernel
    def encode(self, img: jnp.ndarray) -> Tuple[jnp.ndarray, jnp.ndarray]:
        n = img.shape[0]
        mu, logvar = _encode_fn(self.params, img.astype(jnp.float32))
        return (mu.reshape((n,) + self.latent_dims),
                logvar.reshape((n,) + self.latent_dims))

    # ----- decode: (N, Cl, Hl, Wl) -> (N, C, H, W)
    def decode(self, z: jnp.ndarray) -> jnp.ndarray:
        n = z.shape[0]
        out = _decode_fn(self.params, z)
        return out.reshape((n,) + self.img_shape)

    # ----- sample: z ~ N(0, I) in latent space, then decode (like BaseVAE.sample)
    def sample(self, n_samples: int, key) -> jnp.ndarray:
        z = jax.random.normal(key, (n_samples,) + self.latent_dims, jnp.float32)
        return self.decode(z)

    # ----- standalone loss (interface parity; training should use forward()'s fused loss)
    def loss_function(self, img, recons_img, mu, logvar) -> jnp.ndarray:
        return _loss_fn(img, recons_img, mu, logvar)


# ---------------------------------------------------------------------------
# Pure-JAX reference (same bf16-at-MXU-boundary precision convention)
# ---------------------------------------------------------------------------

def _ref_forward(model: BaseVAEPallas, img, key):
    n = img.shape[0]
    x = img.reshape(n, model.d_in).astype(jnp.bfloat16)
    eps = jax.random.normal(key, (n, model.d_lat), jnp.float32)
    stats = jnp.dot(x, model.w_enc, preferred_element_type=jnp.float32) + model.b_enc
    mu = stats[:, :model.d_lat]
    logvar = stats[:, model.d_lat:]
    z = mu + jnp.exp(0.5 * logvar) * eps
    recons = (jnp.dot(z.astype(jnp.bfloat16), model.w_dec,
                      preferred_element_type=jnp.float32) + model.b_dec)
    x_f32 = x.astype(jnp.float32)
    mse = jnp.mean((recons - x_f32) ** 2)
    kld = -0.5 * jnp.mean(jnp.sum(1.0 + logvar - mu * mu - jnp.exp(logvar), axis=-1))
    return recons.reshape((n,) + model.img_shape), mu, logvar, mse + kld


if __name__ == "__main__":
    key = jax.random.PRNGKey(0)
    k_img, k_eps, k_sample = jax.random.split(key, 3)

    # Small shapes consistent with an image VAE: NCHW = (2, 4, 16, 16)
    img = jax.random.normal(k_img, (2, 4, 16, 16), jnp.float32)
    model = BaseVAEPallas(img_shape=(4, 16, 16), latent_dims=(4, 4, 4))

    # Fused forward (+ fused loss partials)
    recons, stats = model.forward(img, k_eps)
    recons = jax.block_until_ready(recons)
    fused_loss = jax.block_until_ready(stats["loss"])

    # Dedicated encode kernel
    mu_e, lv_e = model.encode(img)
    mu_e = jax.block_until_ready(mu_e)

    # Sample path (decode-only kernel), like BaseVAE.sample
    samples = jax.block_until_ready(model.sample(2, k_sample))
    assert samples.shape == (2, 4, 16, 16)

    # Standalone loss kernel (interface parity)
    loss_standalone = jax.block_until_ready(
        model.loss_function(img, recons, stats["mu"], stats["logvar"]))

    # Correctness vs pure-JAX reference
    ref_recons, ref_mu, ref_lv, ref_loss = _ref_forward(model, img, k_eps)
    assert jnp.allclose(stats["mu"], ref_mu, atol=5e-3, rtol=5e-3)
    assert jnp.allclose(stats["logvar"], ref_lv, atol=5e-3, rtol=5e-3)
    assert jnp.allclose(recons, ref_recons, atol=2e-2, rtol=2e-2)
    assert jnp.allclose(fused_loss, ref_loss, atol=5e-2, rtol=5e-2)
    assert jnp.allclose(mu_e.reshape(2, -1), ref_mu, atol=5e-3, rtol=5e-3)
    assert jnp.allclose(lv_e.reshape(2, -1), ref_lv, atol=5e-3, rtol=5e-3)
    # standalone loss uses full-precision img (not bf16-rounded) -> small delta
    assert jnp.allclose(loss_standalone, fused_loss, atol=5e-2, rtol=5e-2)

    print("KERNEL_OK")
</pallas_src>

<mosaic_0001>
module attributes {stable_mosaic.version = 11 : i64} {
  func.func @_fwd_loss_kernel(%arg0: i32, %arg1: memref<8x1024xbf16, #tpu.memory_space<vmem>>, %arg2: memref<8x64xf32, #tpu.memory_space<vmem>>, %arg3: memref<1024x128xbf16, #tpu.memory_space<vmem>>, %arg4: memref<1x128xf32, #tpu.memory_space<vmem>>, %arg5: memref<64x1024xbf16, #tpu.memory_space<vmem>>, %arg6: memref<1x1024xf32, #tpu.memory_space<vmem>>, %arg7: memref<8x1024xf32, #tpu.memory_space<vmem>>, %arg8: memref<8x128xf32, #tpu.memory_space<vmem>>, %arg9: memref<8x128xf32, #tpu.memory_space<vmem>>) attributes {dimension_semantics = [#tpu.dimension_semantics<arbitrary>], iteration_bounds = array<i64: 1>, scalar_prefetch = 0 : i64, scratch_operands = 0 : i64, tpu.core_type = #tpu.core_type<tc>, window_params = [{transform_indices = @transform_0, window_bounds = array<i64: 8, 1024>}, {transform_indices = @transform_1, window_bounds = array<i64: 8, 64>}, {pipeline_mode = #tpu.pipeline_mode<synchronous>, transform_indices = @transform_2, window_bounds = array<i64: 1024, 128>}, {pipeline_mode = #tpu.pipeline_mode<synchronous>, transform_indices = @transform_3, window_bounds = array<i64: 1, 128>}, {pipeline_mode = #tpu.pipeline_mode<synchronous>, transform_indices = @transform_4, window_bounds = array<i64: 64, 1024>}, {pipeline_mode = #tpu.pipeline_mode<synchronous>, transform_indices = @transform_5, window_bounds = array<i64: 1, 1024>}, {transform_indices = @transform_6, window_bounds = array<i64: 8, 1024>}, {transform_indices = @transform_7, window_bounds = array<i64: 8, 128>}, {pipeline_mode = #tpu.pipeline_mode<synchronous>, transform_indices = @transform_8, window_bounds = array<i64: 8, 128>}]} {
    %c0 = arith.constant 0 : index
    %c0_0 = arith.constant 0 : index
    %0 = vector.load %arg1[%c0, %c0_0] : memref<8x1024xbf16, #tpu.memory_space<vmem>>, vector<8x1024xbf16>
    %c0_1 = arith.constant 0 : index
    %c0_2 = arith.constant 0 : index
    %1 = vector.load %arg3[%c0_1, %c0_2] : memref<1024x128xbf16, #tpu.memory_space<vmem>>, vector<1024x128xbf16>
    %cst = arith.constant dense<0.000000e+00> : vector<8x128xf32>
    %2 = tpu.matmul %0, %1, %cst {dimension_numbers = #tpu.dot_dimension_numbers<[1], [0], [0], [1], [0, 0, 1, 1], [], []>} : vector<8x1024xbf16>, vector<1024x128xbf16>, vector<8x128xf32> -> vector<8x128xf32>
    %c0_3 = arith.constant 0 : index
    %c0_4 = arith.constant 0 : index
    %3 = vector.load %arg4[%c0_3, %c0_4] : memref<1x128xf32, #tpu.memory_space<vmem>>, vector<1x128xf32>
    %4 = vector.broadcast %3 : vector<1x128xf32> to vector<8x128xf32>
    %5 = arith.addf %2, %4 : vector<8x128xf32>
    %6 = vector.extract_strided_slice %5 {offsets = [0, 0], sizes = [8, 64], strides = [1, 1]} : vector<8x128xf32> to vector<8x64xf32>
    %7 = vector.extract_strided_slice %5 {offsets = [0, 64], sizes = [8, 64], strides = [1, 1]} : vector<8x128xf32> to vector<8x64xf32>
    %cst_5 = arith.constant 5.000000e-01 : f32
    %8 = vector.broadcast %cst_5 : f32 to vector<8x64xf32>
    %9 = arith.mulf %8, %7 : vector<8x64xf32>
    %10 = math.exp %9 : vector<8x64xf32>
    %11 = arith.mulf %10, %10 : vector<8x64xf32>
    %c0_6 = arith.constant 0 : index
    %c0_7 = arith.constant 0 : index
    %12 = vector.load %arg2[%c0_6, %c0_7] : memref<8x64xf32, #tpu.memory_space<vmem>>, vector<8x64xf32>
    %13 = arith.mulf %10, %12 : vector<8x64xf32>
    %14 = arith.addf %6, %13 : vector<8x64xf32>
    %15 = arith.truncf %14 : vector<8x64xf32> to vector<8x64xbf16>
    %c0_8 = arith.constant 0 : index
    %c0_9 = arith.constant 0 : index
    %16 = vector.load %arg5[%c0_8, %c0_9] : memref<64x1024xbf16, #tpu.memory_space<vmem>>, vector<64x1024xbf16>
    %cst_10 = arith.constant dense<0.000000e+00> : vector<8x1024xf32>
    %17 = tpu.matmul %15, %16, %cst_10 {dimension_numbers = #tpu.dot_dimension_numbers<[1], [0], [0], [1], [0, 0, 1, 1], [], []>} : vector<8x64xbf16>, vector<64x1024xbf16>, vector<8x1024xf32> -> vector<8x1024xf32>
    %c0_11 = arith.constant 0 : index
    %c0_12 = arith.constant 0 : index
    %18 = vector.load %arg6[%c0_11, %c0_12] : memref<1x1024xf32, #tpu.memory_space<vmem>>, vector<1x1024xf32>
    %19 = vector.broadcast %18 : vector<1x1024xf32> to vector<8x1024xf32>
    %20 = arith.addf %17, %19 : vector<8x1024xf32>
    %c0_13 = arith.constant 0 : index
    %c0_14 = arith.constant 0 : index
    %21 = vector.load %arg7[%c0_13, %c0_14] : memref<8x1024xf32, #tpu.memory_space<vmem>>, vector<8x1024xf32>
    tpu.vector_store %arg7[%c0_13, %c0_14], %20 {strides = array<i32>} : memref<8x1024xf32, #tpu.memory_space<vmem>>, vector<8x1024xf32>,
    %c0_15 = arith.constant 0 : index
    %c0_16 = arith.constant 0 : index
    %22 = vector.load %arg8[%c0_15, %c0_16] : memref<8x128xf32, #tpu.memory_space<vmem>>, vector<8x128xf32>
    tpu.vector_store %arg8[%c0_15, %c0_16], %5 {strides = array<i32>} : memref<8x128xf32, #tpu.memory_space<vmem>>, vector<8x128xf32>,
    %23 = tpu.iota {dimensions = array<i32: 0>} : vector<8x128xi32>
    %c8_i32 = arith.constant 8 : i32
    %24 = arith.muli %arg0, %c8_i32 : i32
    %25 = vector.broadcast %24 : i32 to vector<8x128xi32>
    %26 = arith.addi %23, %25 : vector<8x128xi32>
    %c2_i32 = arith.constant 2 : i32
    %27 = vector.broadcast %c2_i32 : i32 to vector<8x128xi32>
    %28 = arith.cmpi slt, %26, %27 : vector<8x128xi32>
    %29 = arith.extui %28 : vector<8x128xi1> to vector<8x128xi32>
    %30 = arith.sitofp %29 : vector<8x128xi32> to vector<8x128xf32>
    %31 = vector.extract_strided_slice %30 {offsets = [0, 0], sizes = [8, 1], strides = [1, 1]} : vector<8x128xf32> to vector<8x1xf32>
    %32 = arith.extf %0 : vector<8x1024xbf16> to vector<8x1024xf32>
    %33 = arith.subf %20, %32 : vector<8x1024xf32>
    %34 = arith.mulf %33, %33 : vector<8x1024xf32>
    %35 = vector.broadcast %31 : vector<8x1xf32> to vector<8x1024xf32>
    %36 = arith.mulf %34, %35 : vector<8x1024xf32>
    %37 = vector.shape_cast %36 : vector<8x1024xf32> to vector<1x8x1024xf32>
    %cst_17 = arith.constant dense<0.000000e+00> : vector<1xf32>
    %38 = vector.multi_reduction <add>, %37, %cst_17 [1, 2] : vector<1x8x1024xf32> to vector<1xf32>
    %39 = vector.shape_cast %38 : vector<1xf32> to vector<1x1x1xf32>
    %40 = vector.extract %39[0, 0, 0] : f32 from vector<1x1x1xf32>
    %cst_18 = arith.constant 1.000000e+00 : f32
    %41 = vector.broadcast %cst_18 : f32 to vector<8x64xf32>
    %42 = arith.addf %41, %7 : vector<8x64xf32>
    %43 = arith.mulf %6, %6 : vector<8x64xf32>
    %44 = arith.subf %42, %43 : vector<8x64xf32>
    %45 = arith.subf %44, %11 : vector<8x64xf32>
    %cst_19 = arith.constant dense<0.000000e+00> : vector<8xf32>
    %46 = vector.multi_reduction <add>, %45, %cst_19 [1] : vector<8x64xf32> to vector<8xf32>
    %47 = vector.shape_cast %46 : vector<8xf32> to vector<8x1xf32>
    %48 = arith.mulf %47, %31 : vector<8x1xf32>
    %49 = vector.shape_cast %48 : vector<8x1xf32> to vector<1x8x1xf32>
    %cst_20 = arith.constant dense<0.000000e+00> : vector<1xf32>
    %50 = vector.multi_reduction <add>, %49, %cst_20 [1, 2] : vector<1x8x1xf32> to vector<1xf32>
    %51 = vector.shape_cast %50 : vector<1xf32> to vector<1x1x1xf32>
    %52 = vector.extract %51[0, 0, 0] : f32 from vector<1x1x1xf32>
    %53 = tpu.iota {dimensions = array<i32: 1>} : vector<8x128xi32>
    %c0_i32 = arith.constant 0 : i32
    %54 = vector.broadcast %c0_i32 : i32 to vector<8x128xi32>
    %55 = arith.cmpi eq, %53, %54 : vector<8x128xi32>
    %cst_21 = arith.constant 0.000000e+00 : f32
    %56 = vector.broadcast %40 : f32 to vector<8x128xf32>
    %57 = vector.broadcast %cst_21 : f32 to vector<8x128xf32>
    %58 = arith.select %55, %56, %57 : vector<8x128xi1>, vector<8x128xf32>
    %c1_i32 = arith.constant 1 : i32
    %59 = vector.broadcast %c1_i32 : i32 to vector<8x128xi32>
    %60 = arith.cmpi eq, %53, %59 : vector<8x128xi32>
    %cst_22 = arith.constant 0.000000e+00 : f32
    %61 = vector.broadcast %52 : f32 to vector<8x128xf32>
    %62 = vector.broadcast %cst_22 : f32 to vector<8x128xf32>
    %63 = arith.select %60, %61, %62 : vector<8x128xi1>, vector<8x128xf32>
    %64 = arith.addf %58, %63 : vector<8x128xf32>
    %c0_i32_23 = arith.constant 0 : i32
    %65 = arith.cmpi eq, %arg0, %c0_i32_23 : i32
    %66 = arith.extui %65 : i1 to i32
    %c0_i32_24 = arith.constant 0 : i32
    %67 = arith.cmpi ne, %66, %c0_i32_24 : i32
    scf.if %67 {
      %cst_29 = arith.constant 0.000000e+00 : f32
      %71 = vector.broadcast %cst_29 : f32 to vector<8x128xf32>
      %c0_30 = arith.constant 0 : index
      %c0_31 = arith.constant 0 : index
      %72 = vector.load %arg9[%c0_30, %c0_31] : memref<8x128xf32, #tpu.memory_space<vmem>>, vector<8x128xf32>
      tpu.vector_store %arg9[%c0_30, %c0_31], %71 {strides = array<i32>} : memref<8x128xf32, #tpu.memory_space<vmem>>, vector<8x128xf32>,
    } else {
    }
    %c0_25 = arith.constant 0 : index
    %c0_26 = arith.constant 0 : index
    %68 = vector.load %arg9[%c0_25, %c0_26] : memref<8x128xf32, #tpu.memory_space<vmem>>, vector<8x128xf32>
    %69 = arith.addf %68, %64 : vector<8x128xf32>
    %c0_27 = arith.constant 0 : index
    %c0_28 = arith.constant 0 : index
    %70 = vector.load %arg9[%c0_27, %c0_28] : memref<8x128xf32, #tpu.memory_space<vmem>>, vector<8x128xf32>
    tpu.vector_store %arg9[%c0_27, %c0_28], %69 {strides = array<i32>} : memref<8x128xf32, #tpu.memory_space<vmem>>, vector<8x128xf32>,
    return
  }
  func.func @transform_0(%arg0: i32) -> (i32, i32) {
    %c0_i32 = arith.constant 0 : i32
    %c0_i32_0 = arith.constant 0 : i32
    return %arg0, %c0_i32 : i32, i32
  }
  func.func @transform_1(%arg0: i32) -> (i32, i32) {
    %c0_i32 = arith.constant 0 : i32
    %c0_i32_0 = arith.constant 0 : i32
    return %arg0, %c0_i32 : i32, i32
  }
  func.func @transform_2(%arg0: i32) -> (i32, i32) {
    %c0_i32 = arith.constant 0 : i32
    %c0_i32_0 = arith.constant 0 : i32
    %c0_i32_1 = arith.constant 0 : i32
    return %c0_i32, %c0_i32_0 : i32, i32
  }
  func.func @transform_3(%arg0: i32) -> (i32, i32) {
    %c0_i32 = arith.constant 0 : i32
    %c0_i32_0 = arith.constant 0 : i32
    %c0_i32_1 = arith.constant 0 : i32
    return %c0_i32, %c0_i32_0 : i32, i32
  }
  func.func @transform_4(%arg0: i32) -> (i32, i32) {
    %c0_i32 = arith.constant 0 : i32
    %c0_i32_0 = arith.constant 0 : i32
    %c0_i32_1 = arith.constant 0 : i32
    return %c0_i32, %c0_i32_0 : i32, i32
  }
  func.func @transform_5(%arg0: i32) -> (i32, i32) {
    %c0_i32 = arith.constant 0 : i32
    %c0_i32_0 = arith.constant 0 : i32
    %c0_i32_1 = arith.constant 0 : i32
    return %c0_i32, %c0_i32_0 : i32, i32
  }
  func.func @transform_6(%arg0: i32) -> (i32, i32) {
    %c0_i32 = arith.constant 0 : i32
    %c0_i32_0 = arith.constant 0 : i32
    return %arg0, %c0_i32 : i32, i32
  }
  func.func @transform_7(%arg0: i32) -> (i32, i32) {
    %c0_i32 = arith.constant 0 : i32
    %c0_i32_0 = arith.constant 0 : i32
    return %arg0, %c0_i32 : i32, i32
  }
  func.func @transform_8(%arg0: i32) -> (i32, i32) {
    %c0_i32 = arith.constant 0 : i32
    %c0_i32_0 = arith.constant 0 : i32
    %c0_i32_1 = arith.constant 0 : i32
    return %c0_i32, %c0_i32_0 : i32, i32
  }
}

</mosaic_0001>

<llo_original>
// kernel: _forward_and_loss.1
$region0: #{_forward_and_loss.1}
  #allocation0 [shape = 'u32[]', space=smem, size = 0x4, offset = 0x4, fixed_abs, tag = 'smem constant byte address 0x4 - core index']
  #allocation1 [shape = 'u32[144,128]{1,0:T(1,128)}', space=vmem, size = 0x12000, scoped, tag = 'internal scratch']
  %s0 = inlined_call_operand.vmem [shape: bf16[8,1024], index: 0, kind: input, shape index: {}]
  %s1 = inlined_call_operand.vmem [shape: f32[8,64], index: 1, kind: input, shape index: {}]
  %s2 = inlined_call_operand.hbm [shape: bf16[1024,128], index: 2, kind: input, shape index: {}]
  %s3 = inlined_call_operand.vmem [shape: f32[1,128], index: 3, kind: input, shape index: {}]
  %s4 = inlined_call_operand.vmem [shape: bf16[64,1024], index: 4, kind: input, shape index: {}]
  %s5 = inlined_call_operand.vmem [shape: f32[1,1024], index: 5, kind: input, shape index: {}]
  %s6 = inlined_call_operand.vmem [shape: f32[8,1024], index: 6, kind: output, shape index: {0}]
  %s7 = inlined_call_operand.vmem [shape: f32[8,128], index: 7, kind: output, shape index: {1}]
  %s8 = inlined_call_operand.vmem [shape: f32[8,128], index: 8, kind: output, shape index: {2}]
  %9 = xla_tuple %s6, %s7, %s8
  %s10 = sld [smem:[#allocation0]]
  $region58: #{_forward_and_loss.1} parent=0
    _
  %s12 = ssub.s32 1, %s10
  %s13 = scalar_select 0, %s12, %s10
  $region1: #{_forward_and_loss.1} parent=0
    #allocation2 [shape = 'u8[262144]{0}', space=vmem, size = 0x40000, scoped, tag = 'input window, operand 2, single buffered']
    #allocation3 [shape = 's32[1]{0}', space=sflag, size = 0x4, scoped, tag = 'scoped memory for _forward_and_loss.1']
    %14 = vsyncpa [#allocation3], 0
    // Predicated region
    $region2: #{_forward_and_loss.1} parent=1 // pred_check
      _
    $region3: #{_forward_and_loss.1} parent=1 // pred_check_branch
      %16 = sbr.rel (0) target = $region5
    $region4: #{_forward_and_loss.1} parent=1 // pred_region
      _
    $region5: #{_forward_and_loss.1} parent=1 // pred_fallthru
      _
    // Predicated region
    $region6: #{_forward_and_loss.1} parent=1 // pred_check
      _
    $region7: #{_forward_and_loss.1} parent=1 // pred_check_branch
      %18 = sbr.rel (0) target = $region9
    $region8: #{_forward_and_loss.1} parent=1 // pred_region
      _
    $region9: #{_forward_and_loss.1} parent=1 // pred_fallthru
      _
    // Predicated region
    $region10: #{_forward_and_loss.1} parent=1 // pred_check
      _
    $region11: #{_forward_and_loss.1} parent=1 // pred_check_branch
      %20 = sbr.rel (0) target = $region13
    $region12: #{_forward_and_loss.1} parent=1 // pred_region
      %s22 = ssub.s32 8192, 8192
      %23 = vsyncadd [#allocation3], %s22
      %s24 = sshll.u32 [#allocation2], 4
      %s25 = int_to_ptr.vmem [resolvable:$true] %s24
      %30 = dma.hbm_to_vmem [thread:$0]  %s2, 8192, %s25, [#allocation3], 64, 64, 4
    $region13: #{_forward_and_loss.1} parent=1 // pred_fallthru
      _
    // Predicated region
    $region14: #{_forward_and_loss.1} parent=1 // pred_check
      _
    $region15: #{_forward_and_loss.1} parent=1 // pred_check_branch
      %32 = sbr.rel (0) target = $region17
    $region16: #{_forward_and_loss.1} parent=1 // pred_region
      _
    $region17: #{_forward_and_loss.1} parent=1 // pred_fallthru
      _
    // Predicated region
    $region18: #{_forward_and_loss.1} parent=1 // pred_check
      _
    $region19: #{_forward_and_loss.1} parent=1 // pred_check_branch
      %34 = sbr.rel (0) target = $region21
    $region20: #{_forward_and_loss.1} parent=1 // pred_region
      _
    $region21: #{_forward_and_loss.1} parent=1 // pred_fallthru
      _
    // Predicated region
    $region22: #{_forward_and_loss.1} parent=1 // pred_check
      _
    $region23: #{_forward_and_loss.1} parent=1 // pred_check_branch
      %36 = sbr.rel (0) target = $region25
    $region24: #{_forward_and_loss.1} parent=1 // pred_region
      _
    $region25: #{_forward_and_loss.1} parent=1 // pred_fallthru
      _
    // Predicated region
    $region26: #{_forward_and_loss.1} parent=1 // pred_check
      _
    $region27: #{_forward_and_loss.1} parent=1 // pred_check_branch
      %38 = sbr.rel (0) target = $region29
    $region28: #{_forward_and_loss.1} parent=1 // pred_region
      %39 = dma.done [#allocation3], 8192
    $region29: #{_forward_and_loss.1} parent=1 // pred_fallthru
      _
    %v41 = vld [vmem:[%s0] sm:$0xff]
    %v42 = vld [vmem:[%s0 + $0x8] sm:$0xff]
    %v43 = vld [vmem:[%s0 + $0x10] sm:$0xff]
    %v44 = vld [vmem:[%s0 + $0x18] sm:$0xff]
    %v45 = vld [vmem:[#allocation2] sm:$0xf]
    %v46 = vld [vmem:[#allocation2 + $0x4] sm:$0xf]
    %v47 = vld [vmem:[#allocation2 + $0x8] sm:$0xf]
    %v48 = vld [vmem:[#allocation2 + $0xc] sm:$0xf]
    %v49 = vld [vmem:[#allocation2 + $0x10] sm:$0xf]
    %v50 = vld [vmem:[#allocation2 + $0x14] sm:$0xf]
    %v51 = vld [vmem:[#allocation2 + $0x18] sm:$0xf]
    %v52 = vld [vmem:[#allocation2 + $0x1c] sm:$0xf]
    %v53 = vld [vmem:[#allocation2 + $0x20] sm:$0xf]
    %v54 = vld [vmem:[#allocation2 + $0x24] sm:$0xf]
    %v55 = vld [vmem:[#allocation2 + $0x28] sm:$0xf]
    %v56 = vld [vmem:[#allocation2 + $0x2c] sm:$0xf]
    %v57 = vld [vmem:[#allocation2 + $0x30] sm:$0xf]
    %v58 = vld [vmem:[#allocation2 + $0x34] sm:$0xf]
    %v59 = vld [vmem:[#allocation2 + $0x38] sm:$0xf]
    %v60 = vld [vmem:[#allocation2 + $0x3c] sm:$0xf]
    %v61 = vld [vmem:[#allocation2 + $0x40] sm:$0xf]
    %v62 = vld [vmem:[#allocation2 + $0x44] sm:$0xf]
    %v63 = vld [vmem:[#allocation2 + $0x48] sm:$0xf]
    %v64 = vld [vmem:[#allocation2 + $0x4c] sm:$0xf]
    %v65 = vld [vmem:[#allocation2 + $0x50] sm:$0xf]
    %v66 = vld [vmem:[#allocation2 + $0x54] sm:$0xf]
    %v67 = vld [vmem:[#allocation2 + $0x58] sm:$0xf]
    %v68 = vld [vmem:[#allocation2 + $0x5c] sm:$0xf]
    %v69 = vld [vmem:[#allocation2 + $0x60] sm:$0xf]
    %v70 = vld [vmem:[#allocation2 + $0x64] sm:$0xf]
    %v71 = vld [vmem:[#allocation2 + $0x68] sm:$0xf]
    %v72 = vld [vmem:[#allocation2 + $0x6c] sm:$0xf]
    %v73 = vld [vmem:[#allocation2 + $0x70] sm:$0xf]
    %v74 = vld [vmem:[#allocation2 + $0x74] sm:$0xf]
    %v75 = vld [vmem:[#allocation2 + $0x78] sm:$0xf]
    %v76 = vld [vmem:[#allocation2 + $0x7c] sm:$0xf]
    %v77 = vld [vmem:[#allocation2 + $0x80] sm:$0xf]
    %v78 = vld [vmem:[#allocation2 + $0x84] sm:$0xf]
    %v79 = vld [vmem:[#allocation2 + $0x88] sm:$0xf]
    %v80 = vld [vmem:[#allocation2 + $0x8c] sm:$0xf]
    %v81 = vld [vmem:[#allocation2 + $0x90] sm:$0xf]
    %v82 = vld [vmem:[#allocation2 + $0x94] sm:$0xf]
    %v83 = vld [vmem:[#allocation2 + $0x98] sm:$0xf]
    %v84 = vld [vmem:[#allocation2 + $0x9c] sm:$0xf]
    %v85 = vld [vmem:[#allocation2 + $0xa0] sm:$0xf]
    %v86 = vld [vmem:[#allocation2 + $0xa4] sm:$0xf]
    %v87 = vld [vmem:[#allocation2 + $0xa8] sm:$0xf]
    %v88 = vld [vmem:[#allocation2 + $0xac] sm:$0xf]
    %v89 = vld [vmem:[#allocation2 + $0xb0] sm:$0xf]
    %v90 = vld [vmem:[#allocation2 + $0xb4] sm:$0xf]
    %v91 = vld [vmem:[#allocation2 + $0xb8] sm:$0xf]
    %v92 = vld [vmem:[#allocation2 + $0xbc] sm:$0xf]
    %v93 = vld [vmem:[#allocation2 + $0xc0] sm:$0xf]
    %v94 = vld [vmem:[#allocation2 + $0xc4] sm:$0xf]
    %v95 = vld [vmem:[#allocation2 + $0xc8] sm:$0xf]
    %v96 = vld [vmem:[#allocation2 + $0xcc] sm:$0xf]
    %v97 = vld [vmem:[#allocation2 + $0xd0] sm:$0xf]
    %v98 = vld [vmem:[#allocation2 + $0xd4] sm:$0xf]
    %v99 = vld [vmem:[#allocation2 + $0xd8] sm:$0xf]
    %v100 = vld [vmem:[#allocation2 + $0xdc] sm:$0xf]
    %v101 = vld [vmem:[#allocation2 + $0xe0] sm:$0xf]
    %v102 = vld [vmem:[#allocation2 + $0xe4] sm:$0xf]
    %v103 = vld [vmem:[#allocation2 + $0xe8] sm:$0xf]
    %v104 = vld [vmem:[#allocation2 + $0xec] sm:$0xf]
    %v105 = vld [vmem:[#allocation2 + $0xf0] sm:$0xf]
    %v106 = vld [vmem:[#allocation2 + $0xf4] sm:$0xf]
    %v107 = vld [vmem:[#allocation2 + $0xf8] sm:$0xf]
    %v108 = vld [vmem:[#allocation2 + $0xfc] sm:$0xf]
    %v109 = vld [vmem:[#allocation2 + $0x100] sm:$0xf]
    %v110 = vld [vmem:[#allocation2 + $0x104] sm:$0xf]
    %v111 = vld [vmem:[#allocation2 + $0x108] sm:$0xf]
    %v112 = vld [vmem:[#allocation2 + $0x10c] sm:$0xf]
    %v113 = vld [vmem:[#allocation2 + $0x110] sm:$0xf]
    %v114 = vld [vmem:[#allocation2 + $0x114] sm:$0xf]
    %v115 = vld [vmem:[#allocation2 + $0x118] sm:$0xf]
    %v116 = vld [vmem:[#allocation2 + $0x11c] sm:$0xf]
    %v117 = vld [vmem:[#allocation2 + $0x120] sm:$0xf]
    %v118 = vld [vmem:[#allocation2 + $0x124] sm:$0xf]
    %v119 = vld [vmem:[#allocation2 + $0x128] sm:$0xf]
    %v120 = vld [vmem:[#allocation2 + $0x12c] sm:$0xf]
    %v121 = vld [vmem:[#allocation2 + $0x130] sm:$0xf]
    %v122 = vld [vmem:[#allocation2 + $0x134] sm:$0xf]
    %v123 = vld [vmem:[#allocation2 + $0x138] sm:$0xf]
    %v124 = vld [vmem:[#allocation2 + $0x13c] sm:$0xf]
    %v125 = vld [vmem:[#allocation2 + $0x140] sm:$0xf]
    %v126 = vld [vmem:[#allocation2 + $0x144] sm:$0xf]
    %v127 = vld [vmem:[#allocation2 + $0x148] sm:$0xf]
    %v128 = vld [vmem:[#allocation2 + $0x14c] sm:$0xf]
    %v129 = vld [vmem:[#allocation2 + $0x150] sm:$0xf]
    %v130 = vld [vmem:[#allocation2 + $0x154] sm:$0xf]
    %v131 = vld [vmem:[#allocation2 + $0x158] sm:$0xf]
    %v132 = vld [vmem:[#allocation2 + $0x15c] sm:$0xf]
    %v133 = vld [vmem:[#allocation2 + $0x160] sm:$0xf]
    %v134 = vld [vmem:[#allocation2 + $0x164] sm:$0xf]
    %v135 = vld [vmem:[#allocation2 + $0x168] sm:$0xf]
    %v136 = vld [vmem:[#allocation2 + $0x16c] sm:$0xf]
    %v137 = vld [vmem:[#allocation2 + $0x170] sm:$0xf]
    %v138 = vld [vmem:[#allocation2 + $0x174] sm:$0xf]
    %v139 = vld [vmem:[#allocation2 + $0x178] sm:$0xf]
    %v140 = vld [vmem:[#allocation2 + $0x17c] sm:$0xf]
    %v141 = vld [vmem:[#allocation2 + $0x180] sm:$0xf]
    %v142 = vld [vmem:[#allocation2 + $0x184] sm:$0xf]
    %v143 = vld [vmem:[#allocation2 + $0x188] sm:$0xf]
    %v144 = vld [vmem:[#allocation2 + $0x18c] sm:$0xf]
    %v145 = vld [vmem:[#allocation2 + $0x190] sm:$0xf]
    %v146 = vld [vmem:[#allocation2 + $0x194] sm:$0xf]
    %v147 = vld [vmem:[#allocation2 + $0x198] sm:$0xf]
    %v148 = vld [vmem:[#allocation2 + $0x19c] sm:$0xf]
    %v149 = vld [vmem:[#allocation2 + $0x1a0] sm:$0xf]
    %v150 = vld [vmem:[#allocation2 + $0x1a4] sm:$0xf]
    %v151 = vld [vmem:[#allocation2 + $0x1a8] sm:$0xf]
    %v152 = vld [vmem:[#allocation2 + $0x1ac] sm:$0xf]
    %v153 = vld [vmem:[#allocation2 + $0x1b0] sm:$0xf]
    %v154 = vld [vmem:[#allocation2 + $0x1b4] sm:$0xf]
    %v155 = vld [vmem:[#allocation2 + $0x1b8] sm:$0xf]
    %v156 = vld [vmem:[#allocation2 + $0x1bc] sm:$0xf]
    %v157 = vld [vmem:[#allocation2 + $0x1c0] sm:$0xf]
    %v158 = vld [vmem:[#allocation2 + $0x1c4] sm:$0xf]
    %v159 = vld [vmem:[#allocation2 + $0x1c8] sm:$0xf]
    %v160 = vld [vmem:[#allocation2 + $0x1cc] sm:$0xf]
    %v161 = vld [vmem:[#allocation2 + $0x1d0] sm:$0xf]
    %v162 = vld [vmem:[#allocation2 + $0x1d4] sm:$0xf]
    %v163 = vld [vmem:[#allocation2 + $0x1d8] sm:$0xf]
    %v164 = vld [vmem:[#allocation2 + $0x1dc] sm:$0xf]
    %v165 = vld [vmem:[#allocation2 + $0x1e0] sm:$0xf]
    %v166 = vld [vmem:[#allocation2 + $0x1e4] sm:$0xf]
    %v167 = vld [vmem:[#allocation2 + $0x1e8] sm:$0xf]
    %v168 = vld [vmem:[#allocation2 + $0x1ec] sm:$0xf]
    %v169 = vld [vmem:[#allocation2 + $0x1f0] sm:$0xf]
    %v170 = vld [vmem:[#allocation2 + $0x1f4] sm:$0xf]
    %v171 = vld [vmem:[#allocation2 + $0x1f8] sm:$0xf]
    %v172 = vld [vmem:[#allocation2 + $0x1fc] sm:$0xf]
    %v173 = vld [vmem:[%s3] sm:$0x1]
    %v175 = vlaneseq
    %v176 = vshrl.u32 %v175, 7
    %v177 = vsub.s32 0, %v176
    %v178 = vrot.slane %v173, %v177
    %v184 = vunpack.c.l.b16 %v41
    %v185 = vunpack.c.h.b16 %v41
    %v186 = vunpack.c.l.b16 %v42
    %v187 = vunpack.c.h.b16 %v42
    %v188 = vunpack.c.l.b16 %v43
    %v189 = vunpack.c.h.b16 %v43
    %v190 = vunpack.c.l.b16 %v44
    %v191 = vunpack.c.h.b16 %v44
    %v192 = vpack.c.b16 %v184, %v184
    %v193 = vpack.c.b16 %v185, %v185
    %v194 = vpack.c.b16 %v186, %v186
    %v195 = vpack.c.b16 %v187, %v187
    %v196 = vpack.c.b16 %v188, %v188
    %v197 = vpack.c.b16 %v189, %v189
    %v198 = vpack.c.b16 %v190, %v190
    %v199 = vpack.c.b16 %v191, %v191
    %v336 = vunpack.c.l.b16 %v45
    %v337 = vunpack.c.l.b16 %v46
    %v338 = vunpack.c.l.b16 %v47
    %v339 = vunpack.c.l.b16 %v48
    %v340 = vunpack.c.l.b16 %v49
    %v341 = vunpack.c.l.b16 %v50
    %v342 = vunpack.c.l.b16 %v51
    %v343 = vunpack.c.l.b16 %v52
    %v344 = vunpack.c.l.b16 %v53
    %v345 = vunpack.c.l.b16 %v54
    %v346 = vunpack.c.l.b16 %v55
    %v347 = vunpack.c.l.b16 %v56
    %v348 = vunpack.c.l.b16 %v57
    %v349 = vunpack.c.l.b16 %v58
    %v350 = vunpack.c.l.b16 %v59
    %v351 = vunpack.c.l.b16 %v60
    %v352 = vunpack.c.l.b16 %v61
    %v353 = vunpack.c.l.b16 %v62
    %v354 = vunpack.c.l.b16 %v63
    %v355 = vunpack.c.l.b16 %v64
    %v356 = vunpack.c.l.b16 %v65
    %v357 = vunpack.c.l.b16 %v66
    %v358 = vunpack.c.l.b16 %v67
    %v359 = vunpack.c.l.b16 %v68
    %v360 = vunpack.c.l.b16 %v69
    %v361 = vunpack.c.l.b16 %v70
    %v362 = vunpack.c.l.b16 %v71
    %v363 = vunpack.c.l.b16 %v72
    %v364 = vunpack.c.l.b16 %v73
    %v365 = vunpack.c.l.b16 %v74
    %v366 = vunpack.c.l.b16 %v75
    %v367 = vunpack.c.l.b16 %v76
    %v368 = vunpack.c.l.b16 %v77
    %v369 = vunpack.c.l.b16 %v78
    %v370 = vunpack.c.l.b16 %v79
    %v371 = vunpack.c.l.b16 %v80
    %v372 = vunpack.c.l.b16 %v81
    %v373 = vunpack.c.l.b16 %v82
    %v374 = vunpack.c.l.b16 %v83
    %v375 = vunpack.c.l.b16 %v84
    %v376 = vunpack.c.l.b16 %v85
    %v377 = vunpack.c.l.b16 %v86
    %v378 = vunpack.c.l.b16 %v87
    %v379 = vunpack.c.l.b16 %v88
    %v380 = vunpack.c.l.b16 %v89
    %v381 = vunpack.c.l.b16 %v90
    %v382 = vunpack.c.l.b16 %v91
    %v383 = vunpack.c.l.b16 %v92
    %v384 = vunpack.c.l.b16 %v93
    %v385 = vunpack.c.l.b16 %v94
    %v386 = vunpack.c.l.b16 %v95
    %v387 = vunpack.c.l.b16 %v96
    %v388 = vunpack.c.l.b16 %v97
    %v389 = vunpack.c.l.b16 %v98
    %v390 = vunpack.c.l.b16 %v99
    %v391 = vunpack.c.l.b16 %v100
    %v392 = vunpack.c.l.b16 %v101
    %v393 = vunpack.c.l.b16 %v102
    %v394 = vunpack.c.l.b16 %v103
    %v395 = vunpack.c.l.b16 %v104
    %v396 = vunpack.c.l.b16 %v105
    %v397 = vunpack.c.l.b16 %v106
    %v398 = vunpack.c.l.b16 %v107
    %v399 = vunpack.c.l.b16 %v108
    %v400 = vunpack.c.l.b16 %v109
    %v401 = vunpack.c.l.b16 %v110
    %v402 = vunpack.c.l.b16 %v111
    %v403 = vunpack.c.l.b16 %v112
    %v404 = vunpack.c.l.b16 %v113
    %v405 = vunpack.c.l.b16 %v114
    %v406 = vunpack.c.l.b16 %v115
    %v407 = vunpack.c.l.b16 %v116
    %v408 = vunpack.c.l.b16 %v117
    %v409 = vunpack.c.l.b16 %v118
    %v410 = vunpack.c.l.b16 %v119
    %v411 = vunpack.c.l.b16 %v120
    %v412 = vunpack.c.l.b16 %v121
    %v413 = vunpack.c.l.b16 %v122
    %v414 = vunpack.c.l.b16 %v123
    %v415 = vunpack.c.l.b16 %v124
    %v416 = vunpack.c.l.b16 %v125
    %v417 = vunpack.c.l.b16 %v126
    %v418 = vunpack.c.l.b16 %v127
    %v419 = vunpack.c.l.b16 %v128
    %v420 = vunpack.c.l.b16 %v129
    %v421 = vunpack.c.l.b16 %v130
    %v422 = vunpack.c.l.b16 %v131
    %v423 = vunpack.c.l.b16 %v132
    %v424 = vunpack.c.l.b16 %v133
    %v425 = vunpack.c.l.b16 %v134
    %v426 = vunpack.c.l.b16 %v135
    %v427 = vunpack.c.l.b16 %v136
    %v428 = vunpack.c.l.b16 %v137
    %v429 = vunpack.c.l.b16 %v138
    %v430 = vunpack.c.l.b16 %v139
    %v431 = vunpack.c.l.b16 %v140
    %v432 = vunpack.c.l.b16 %v141
    %v433 = vunpack.c.l.b16 %v142
    %v434 = vunpack.c.l.b16 %v143
    %v435 = vunpack.c.l.b16 %v144
    %v436 = vunpack.c.l.b16 %v145
    %v437 = vunpack.c.l.b16 %v146
    %v438 = vunpack.c.l.b16 %v147
    %v439 = vunpack.c.l.b16 %v148
    %v440 = vunpack.c.l.b16 %v149
    %v441 = vunpack.c.l.b16 %v150
    %v442 = vunpack.c.l.b16 %v151
    %v443 = vunpack.c.l.b16 %v152
    %v444 = vunpack.c.l.b16 %v153
    %v445 = vunpack.c.l.b16 %v154
    %v446 = vunpack.c.l.b16 %v155
    %v447 = vunpack.c.l.b16 %v156
    %v448 = vunpack.c.l.b16 %v157
    %v449 = vunpack.c.l.b16 %v158
    %v450 = vunpack.c.l.b16 %v159
    %v451 = vunpack.c.l.b16 %v160
    %v452 = vunpack.c.l.b16 %v161
    %v453 = vunpack.c.l.b16 %v162
    %v454 = vunpack.c.l.b16 %v163
    %v455 = vunpack.c.l.b16 %v164
    %v456 = vunpack.c.l.b16 %v165
    %v457 = vunpack.c.l.b16 %v166
    %v458 = vunpack.c.l.b16 %v167
    %v459 = vunpack.c.l.b16 %v168
    %v460 = vunpack.c.l.b16 %v169
    %v461 = vunpack.c.l.b16 %v170
    %v462 = vunpack.c.l.b16 %v171
    %v463 = vunpack.c.l.b16 %v172
    %v464 = vpack.c.b16 %v337, %v336
    %v465 = vpack.c.b16 %v339, %v338
    %v466 = vpack.c.b16 %v341, %v340
    %v467 = vpack.c.b16 %v343, %v342
    %v468 = vpack.c.b16 %v345, %v344
    %v469 = vpack.c.b16 %v347, %v346
    %v470 = vpack.c.b16 %v349, %v348
    %v471 = vpack.c.b16 %v351, %v350
    %v472 = vpack.c.b16 %v353, %v352
    %v473 = vpack.c.b16 %v355, %v354
    %v474 = vpack.c.b16 %v357, %v356
    %v475 = vpack.c.b16 %v359, %v358
    %v476 = vpack.c.b16 %v361, %v360
    %v477 = vpack.c.b16 %v363, %v362
    %v478 = vpack.c.b16 %v365, %v364
    %v479 = vpack.c.b16 %v367, %v366
    %v480 = vpack.c.b16 %v369, %v368
    %v481 = vpack.c.b16 %v371, %v370
    %v482 = vpack.c.b16 %v373, %v372
    %v483 = vpack.c.b16 %v375, %v374
    %v484 = vpack.c.b16 %v377, %v376
    %v485 = vpack.c.b16 %v379, %v378
    %v486 = vpack.c.b16 %v381, %v380
    %v487 = vpack.c.b16 %v383, %v382
    %v488 = vpack.c.b16 %v385, %v384
    %v489 = vpack.c.b16 %v387, %v386
    %v490 = vpack.c.b16 %v389, %v388
    %v491 = vpack.c.b16 %v391, %v390
    %v492 = vpack.c.b16 %v393, %v392
    %v493 = vpack.c.b16 %v395, %v394
    %v494 = vpack.c.b16 %v397, %v396
    %v495 = vpack.c.b16 %v399, %v398
    %v496 = vpack.c.b16 %v401, %v400
    %v497 = vpack.c.b16 %v403, %v402
    %v498 = vpack.c.b16 %v405, %v404
    %v499 = vpack.c.b16 %v407, %v406
    %v500 = vpack.c.b16 %v409, %v408
    %v501 = vpack.c.b16 %v411, %v410
    %v502 = vpack.c.b16 %v413, %v412
    %v503 = vpack.c.b16 %v415, %v414
    %v504 = vpack.c.b16 %v417, %v416
    %v505 = vpack.c.b16 %v419, %v418
    %v506 = vpack.c.b16 %v421, %v420
    %v507 = vpack.c.b16 %v423, %v422
    %v508 = vpack.c.b16 %v425, %v424
    %v509 = vpack.c.b16 %v427, %v426
    %v510 = vpack.c.b16 %v429, %v428
    %v511 = vpack.c.b16 %v431, %v430
    %v512 = vpack.c.b16 %v433, %v432
    %v513 = vpack.c.b16 %v435, %v434
    %v514 = vpack.c.b16 %v437, %v436
    %v515 = vpack.c.b16 %v439, %v438
    %v516 = vpack.c.b16 %v441, %v440
    %v517 = vpack.c.b16 %v443, %v442
    %v518 = vpack.c.b16 %v445, %v444
    %v519 = vpack.c.b16 %v447, %v446
    %v520 = vpack.c.b16 %v449, %v448
    %v521 = vpack.c.b16 %v451, %v450
    %v522 = vpack.c.b16 %v453, %v452
    %v523 = vpack.c.b16 %v455, %v454
    %v524 = vpack.c.b16 %v457, %v456
    %v525 = vpack.c.b16 %v459, %v458
    %v526 = vpack.c.b16 %v461, %v460
    %v527 = vpack.c.b16 %v463, %v462
    %592 = vmatprep.subr.bf16.mxu0 0
    %593 = vmatpush1.bf16.msra.mxu0 %v464
    %594 = vmatprep.subr.bf16.mxu0 0
    %595 = vmatpush1.bf16.msra.mxu0 %v465
    %596 = vmatprep.subr.bf16.mxu0 0
    %597 = vmatpush1.bf16.msra.mxu0 %v466
    %598 = vmatprep.subr.bf16.mxu0 0
    %599 = vmatpush1.bf16.msra.mxu0 %v467
    %600 = vmatprep.subr.bf16.mxu0 0
    %601 = vmatpush1.bf16.msra.mxu0 %v468
    %602 = vmatprep.subr.bf16.mxu0 0
    %603 = vmatpush1.bf16.msra.mxu0 %v469
    %604 = vmatprep.subr.bf16.mxu0 0
    %605 = vmatpush1.bf16.msra.mxu0 %v470
    %606 = vmatprep.subr.bf16.mxu0 0
    %607 = vmatpush1.bf16.msra.mxu0 %v471
    %608 = vmatprep.subr.bf16.mxu0 0
    %609 = vmatpush1.bf16.msra.mxu0 %v472
    %610 = vmatprep.subr.bf16.mxu0 0
    %611 = vmatpush1.bf16.msra.mxu0 %v473
    %612 = vmatprep.subr.bf16.mxu0 0
    %613 = vmatpush1.bf16.msra.mxu0 %v474
    %614 = vmatprep.subr.bf16.mxu0 0
    %615 = vmatpush1.bf16.msra.mxu0 %v475
    %616 = vmatprep.subr.bf16.mxu0 0
    %617 = vmatpush1.bf16.msra.mxu0 %v476
    %618 = vmatprep.subr.bf16.mxu0 0
    %619 = vmatpush1.bf16.msra.mxu0 %v477
    %620 = vmatprep.subr.bf16.mxu0 0
    %621 = vmatpush1.bf16.msra.mxu0 %v478
    %622 = vmatprep.subr.bf16.mxu0 0
    %623 = vmatpush1.bf16.msra.mxu0 %v479
    %624 = vmatprep.mubr.bf16.mxu0 %v193
    %625 = vmatmul.mubr.bf16.gmra.mrb[0].mxu0 %v192
    %v626 = vpop.f32.mrb[0].mxu0
    %v627 = vadd.f32 %v178, %v626
    %v628 = vpop.f32.mrb[0].mxu0
    %v629 = vpop.f32.mrb[0].mxu0
    %v630 = vpop.f32.mrb[0].mxu0
    %631 = vdwg.mxu0
    %632 = vmatprep.subr.bf16.mxu0 0
    %633 = vmatpush1.bf16.msra.mxu0 %v480
    %634 = vmatprep.subr.bf16.mxu0 0
    %635 = vmatpush1.bf16.msra.mxu0 %v481
    %636 = vmatprep.subr.bf16.mxu0 0
    %637 = vmatpush1.bf16.msra.mxu0 %v482
    %638 = vmatprep.subr.bf16.mxu0 0
    %639 = vmatpush1.bf16.msra.mxu0 %v483
    %640 = vmatprep.subr.bf16.mxu0 0
    %641 = vmatpush1.bf16.msra.mxu0 %v484
    %642 = vmatprep.subr.bf16.mxu0 0
    %643 = vmatpush1.bf16.msra.mxu0 %v485
    %644 = vmatprep.subr.bf16.mxu0 0
    %645 = vmatpush1.bf16.msra.mxu0 %v486
    %646 = vmatprep.subr.bf16.mxu0 0
    %647 = vmatpush1.bf16.msra.mxu0 %v487
    %648 = vmatprep.subr.bf16.mxu0 0
    %649 = vmatpush1.bf16.msra.mxu0 %v488
    %650 = vmatprep.subr.bf16.mxu0 0
    %651 = vmatpush1.bf16.msra.mxu0 %v489
    %652 = vmatprep.subr.bf16.mxu0 0
    %653 = vmatpush1.bf16.msra.mxu0 %v490
    %654 = vmatprep.subr.bf16.mxu0 0
    %655 = vmatpush1.bf16.msra.mxu0 %v491
    %656 = vmatprep.subr.bf16.mxu0 0
    %657 = vmatpush1.bf16.msra.mxu0 %v492
    %658 = vmatprep.subr.bf16.mxu0 0
    %659 = vmatpush1.bf16.msra.mxu0 %v493
    %660 = vmatprep.subr.bf16.mxu0 0
    %661 = vmatpush1.bf16.msra.mxu0 %v494
    %662 = vmatprep.subr.bf16.mxu0 0
    %663 = vmatpush1.bf16.msra.mxu0 %v495
    %664 = vmatprep.mubr.bf16.mxu0 %v195
    %665 = vmatmul.mubr.bf16.gmra.mrb[0].mxu0 %v194
    %v666 = vpop.f32.mrb[0].mxu0
    %v667 = vadd.f32 %v627, %v666
    %v668 = vpop.f32.mrb[0].mxu0
    %v669 = vpop.f32.mrb[0].mxu0
    %v670 = vpop.f32.mrb[0].mxu0
    %671 = vdwg.mxu0
    %672 = vmatprep.subr.bf16.mxu0 0
    %673 = vmatpush1.bf16.msra.mxu0 %v496
    %674 = vmatprep.subr.bf16.mxu0 0
    %675 = vmatpush1.bf16.msra.mxu0 %v497
    %676 = vmatprep.subr.bf16.mxu0 0
    %677 = vmatpush1.bf16.msra.mxu0 %v498
    %678 = vmatprep.subr.bf16.mxu0 0
    %679 = vmatpush1.bf16.msra.mxu0 %v499
    %680 = vmatprep.subr.bf16.mxu0 0
    %681 = vmatpush1.bf16.msra.mxu0 %v500
    %682 = vmatprep.subr.bf16.mxu0 0
    %683 = vmatpush1.bf16.msra.mxu0 %v501
    %684 = vmatprep.subr.bf16.mxu0 0
    %685 = vmatpush1.bf16.msra.mxu0 %v502
    %686 = vmatprep.subr.bf16.mxu0 0
    %687 = vmatpush1.bf16.msra.mxu0 %v503
    %688 = vmatprep.subr.bf16.mxu0 0
    %689 = vmatpush1.bf16.msra.mxu0 %v504
    %690 = vmatprep.subr.bf16.mxu0 0
    %691 = vmatpush1.bf16.msra.mxu0 %v505
    %692 = vmatprep.subr.bf16.mxu0 0
    %693 = vmatpush1.bf16.msra.mxu0 %v506
    %694 = vmatprep.subr.bf16.mxu0 0
    %695 = vmatpush1.bf16.msra.mxu0 %v507
    %696 = vmatprep.subr.bf16.mxu0 0
    %697 = vmatpush1.bf16.msra.mxu0 %v508
    %698 = vmatprep.subr.bf16.mxu0 0
    %699 = vmatpush1.bf16.msra.mxu0 %v509
    %700 = vmatprep.subr.bf16.mxu0 0
    %701 = vmatpush1.bf16.msra.mxu0 %v510
    %702 = vmatprep.subr.bf16.mxu0 0
    %703 = vmatpush1.bf16.msra.mxu0 %v511
    %704 = vmatprep.mubr.bf16.mxu0 %v197
    %705 = vmatmul.mubr.bf16.gmra.mrb[0].mxu0 %v196
    %v706 = vpop.f32.mrb[0].mxu0
    %v707 = vadd.f32 %v667, %v706
    %v708 = vpop.f32.mrb[0].mxu0
    %v709 = vpop.f32.mrb[0].mxu0
    %v710 = vpop.f32.mrb[0].mxu0
    %711 = vdwg.mxu0
    %712 = vmatprep.subr.bf16.mxu0 0
    %713 = vmatpush1.bf16.msra.mxu0 %v512
    %714 = vmatprep.subr.bf16.mxu0 0
    %715 = vmatpush1.bf16.msra.mxu0 %v513
    %716 = vmatprep.subr.bf16.mxu0 0
    %717 = vmatpush1.bf16.msra.mxu0 %v514
    %718 = vmatprep.subr.bf16.mxu0 0
    %719 = vmatpush1.bf16.msra.mxu0 %v515
    %720 = vmatprep.subr.bf16.mxu0 0
    %721 = vmatpush1.bf16.msra.mxu0 %v516
    %722 = vmatprep.subr.bf16.mxu0 0
    %723 = vmatpush1.bf16.msra.mxu0 %v517
    %724 = vmatprep.subr.bf16.mxu0 0
    %725 = vmatpush1.bf16.msra.mxu0 %v518
    %726 = vmatprep.subr.bf16.mxu0 0
    %727 = vmatpush1.bf16.msra.mxu0 %v519
    %728 = vmatprep.subr.bf16.mxu0 0
    %729 = vmatpush1.bf16.msra.mxu0 %v520
    %730 = vmatprep.subr.bf16.mxu0 0
    %731 = vmatpush1.bf16.msra.mxu0 %v521
    %732 = vmatprep.subr.bf16.mxu0 0
    %733 = vmatpush1.bf16.msra.mxu0 %v522
    %734 = vmatprep.subr.bf16.mxu0 0
    %735 = vmatpush1.bf16.msra.mxu0 %v523
    %736 = vmatprep.subr.bf16.mxu0 0
    %737 = vmatpush1.bf16.msra.mxu0 %v524
    %738 = vmatprep.subr.bf16.mxu0 0
    %739 = vmatpush1.bf16.msra.mxu0 %v525
    %740 = vmatprep.subr.bf16.mxu0 0
    %741 = vmatpush1.bf16.msra.mxu0 %v526
    %742 = vmatprep.subr.bf16.mxu0 0
    %743 = vmatpush1.bf16.msra.mxu0 %v527
    %744 = vmatprep.mubr.bf16.mxu0 %v199
    %745 = vmatmul.mubr.bf16.gmra.mrb[0].mxu0 %v198
    %v746 = vpop.f32.mrb[0].mxu0
    %v747 = vadd.f32 %v707, %v746
    %v748 = vpop.f32.mrb[0].mxu0
    %v749 = vpop.f32.mrb[0].mxu0
    %v750 = vpop.f32.mrb[0].mxu0
    %751 = vdwg.mxu0
    %v752 = vmul.f32 %v747, 0.5
    %v753 = vmul.f32 %v752, 1.442695
    %v754 = vpow.pop %v753
    %v755 = vmul.f32 %v754, %v754
    %v756 = vld [vmem:[%s1] sm:$0xff]
    %758 = vrot.lane.b32.xlu0 %v756, 64
    %v759 = vpop.permute.xlu0 %758
    %v761 = vmul.f32 %v754, %v759
    %763 = vrot.lane.b32.xlu0 %v761, 64
    %v764 = vpop.permute.xlu0 %763
    %v766 = vadd.f32 %v747, %v764
    %v767 = vpack.c.bf16 %v766, %v766
    %v768 = vld [vmem:[%s4] sm:$0xff]
    %v769 = vld [vmem:[%s4 + $0x8] sm:$0xff]
    %v770 = vld [vmem:[%s4 + $0x10] sm:$0xff]
    %v771 = vld [vmem:[%s4 + $0x18] sm:$0xff]
    %v772 = vld [vmem:[%s4 + $0x20] sm:$0xff]
    %v773 = vld [vmem:[%s4 + $0x28] sm:$0xff]
    %v774 = vld [vmem:[%s4 + $0x30] sm:$0xff]
    %v775 = vld [vmem:[%s4 + $0x38] sm:$0xff]
    %v776 = vld [vmem:[%s4 + $0x40] sm:$0xff]
    %v777 = vld [vmem:[%s4 + $0x48] sm:$0xff]
    %v778 = vld [vmem:[%s4 + $0x50] sm:$0xff]
    %v779 = vld [vmem:[%s4 + $0x58] sm:$0xff]
    %v780 = vld [vmem:[%s4 + $0x60] sm:$0xff]
    %v781 = vld [vmem:[%s4 + $0x68] sm:$0xff]
    %v782 = vld [vmem:[%s4 + $0x70] sm:$0xff]
    %v783 = vld [vmem:[%s4 + $0x78] sm:$0xff]
    %v784 = vld [vmem:[%s4 + $0x80] sm:$0xff]
    %v785 = vld [vmem:[%s4 + $0x88] sm:$0xff]
    %v786 = vld [vmem:[%s4 + $0x90] sm:$0xff]
    %v787 = vld [vmem:[%s4 + $0x98] sm:$0xff]
    %v788 = vld [vmem:[%s4 + $0xa0] sm:$0xff]
    %v789 = vld [vmem:[%s4 + $0xa8] sm:$0xff]
    %v790 = vld [vmem:[%s4 + $0xb0] sm:$0xff]
    %v791 = vld [vmem:[%s4 + $0xb8] sm:$0xff]
    %v792 = vld [vmem:[%s4 + $0xc0] sm:$0xff]
    %v793 = vld [vmem:[%s4 + $0xc8] sm:$0xff]
    %v794 = vld [vmem:[%s4 + $0xd0] sm:$0xff]
    %v795 = vld [vmem:[%s4 + $0xd8] sm:$0xff]
    %v796 = vld [vmem:[%s4 + $0xe0] sm:$0xff]
    %v797 = vld [vmem:[%s4 + $0xe8] sm:$0xff]
    %v798 = vld [vmem:[%s4 + $0xf0] sm:$0xff]
    %v799 = vld [vmem:[%s4 + $0xf8] sm:$0xff]
    %v800 = vld [vmem:[%s5] sm:$0xff]
    %v802 = vlaneseq
    %v803 = vshrl.u32 %v802, 7
    %v804 = vsub.s32 0, %v803
    %v805 = vrot.slane %v800, %v804
    %v806 = vlaneseq
    %v807 = vshrl.u32 %v806, 7
    %v808 = vsub.s32 1, %v807
    %v809 = vrot.slane %v800, %v808
    %v810 = vlaneseq
    %v811 = vshrl.u32 %v810, 7
    %v812 = vsub.s32 2, %v811
    %v813 = vrot.slane %v800, %v812
    %v814 = vlaneseq
    %v815 = vshrl.u32 %v814, 7
    %v816 = vsub.s32 3, %v815
    %v817 = vrot.slane %v800, %v816
    %v818 = vlaneseq
    %v819 = vshrl.u32 %v818, 7
    %v820 = vsub.s32 4, %v819
    %v821 = vrot.slane %v800, %v820
    %v822 = vlaneseq
    %v823 = vshrl.u32 %v822, 7
    %v824 = vsub.s32 5, %v823
    %v825 = vrot.slane %v800, %v824
    %v826 = vlaneseq
    %v827 = vshrl.u32 %v826, 7
    %v828 = vsub.s32 6, %v827
    %v829 = vrot.slane %v800, %v828
    %v830 = vlaneseq
    %v831 = vshrl.u32 %v830, 7
    %v832 = vsub.s32 7, %v831
    %v833 = vrot.slane %v800, %v832
    %v874 = vunpack.c.l.b16 %v768
    %v875 = vunpack.c.h.b16 %v768
    %v876 = vunpack.c.l.b16 %v769
    %v877 = vunpack.c.h.b16 %v769
    %v878 = vunpack.c.l.b16 %v770
    %v879 = vunpack.c.h.b16 %v770
    %v880 = vunpack.c.l.b16 %v771
    %v881 = vunpack.c.h.b16 %v771
    %v882 = vunpack.c.l.b16 %v772
    %v883 = vunpack.c.h.b16 %v772
    %v884 = vunpack.c.l.b16 %v773
    %v885 = vunpack.c.h.b16 %v773
    %v886 = vunpack.c.l.b16 %v774
    %v887 = vunpack.c.h.b16 %v774
    %v888 = vunpack.c.l.b16 %v775
    %v889 = vunpack.c.h.b16 %v775
    %v890 = vunpack.c.l.b16 %v776
    %v891 = vunpack.c.h.b16 %v776
    %v892 = vunpack.c.l.b16 %v777
    %v893 = vunpack.c.h.b16 %v777
    %v894 = vunpack.c.l.b16 %v778
    %v895 = vunpack.c.h.b16 %v778
    %v896 = vunpack.c.l.b16 %v779
    %v897 = vunpack.c.h.b16 %v779
    %v898 = vunpack.c.l.b16 %v780
    %v899 = vunpack.c.h.b16 %v780
    %v900 = vunpack.c.l.b16 %v781
    %v901 = vunpack.c.h.b16 %v781
    %v902 = vunpack.c.l.b16 %v782
    %v903 = vunpack.c.h.b16 %v782
    %v904 = vunpack.c.l.b16 %v783
    %v905 = vunpack.c.h.b16 %v783
    %v906 = vunpack.c.l.b16 %v784
    %v907 = vunpack.c.h.b16 %v784
    %v908 = vunpack.c.l.b16 %v785
    %v909 = vunpack.c.h.b16 %v785
    %v910 = vunpack.c.l.b16 %v786
    %v911 = vunpack.c.h.b16 %v786
    %v912 = vunpack.c.l.b16 %v787
    %v913 = vunpack.c.h.b16 %v787
    %v914 = vunpack.c.l.b16 %v788
    %v915 = vunpack.c.h.b16 %v788
    %v916 = vunpack.c.l.b16 %v789
    %v917 = vunpack.c.h.b16 %v789
    %v918 = vunpack.c.l.b16 %v790
    %v919 = vunpack.c.h.b16 %v790
    %v920 = vunpack.c.l.b16 %v791
    %v921 = vunpack.c.h.b16 %v791
    %v922 = vunpack.c.l.b16 %v792
    %v923 = vunpack.c.h.b16 %v792
    %v924 = vunpack.c.l.b16 %v793
    %v925 = vunpack.c.h.b16 %v793
    %v926 = vunpack.c.l.b16 %v794
    %v927 = vunpack.c.h.b16 %v794
    %v928 = vunpack.c.l.b16 %v795
    %v929 = vunpack.c.h.b16 %v795
    %v930 = vunpack.c.l.b16 %v796
    %v931 = vunpack.c.h.b16 %v796
    %v932 = vunpack.c.l.b16 %v797
    %v933 = vunpack.c.h.b16 %v797
    %v934 = vunpack.c.l.b16 %v798
    %v935 = vunpack.c.h.b16 %v798
    %v936 = vunpack.c.l.b16 %v799
    %v937 = vunpack.c.h.b16 %v799
    %v938 = vpack.c.b16 %v882, %v874
    %v939 = vpack.c.b16 %v883, %v875
    %v940 = vpack.c.b16 %v884, %v876
    %v941 = vpack.c.b16 %v885, %v877
    %v942 = vpack.c.b16 %v886, %v878
    %v943 = vpack.c.b16 %v887, %v879
    %v944 = vpack.c.b16 %v888, %v880
    %v945 = vpack.c.b16 %v889, %v881
    %v946 = vpack.c.b16 %v898, %v890
    %v947 = vpack.c.b16 %v899, %v891
    %v948 = vpack.c.b16 %v900, %v892
    %v949 = vpack.c.b16 %v901, %v893
    %v950 = vpack.c.b16 %v902, %v894
    %v951 = vpack.c.b16 %v903, %v895
    %v952 = vpack.c.b16 %v904, %v896
    %v953 = vpack.c.b16 %v905, %v897
    %v954 = vpack.c.b16 %v914, %v906
    %v955 = vpack.c.b16 %v915, %v907
    %v956 = vpack.c.b16 %v916, %v908
    %v957 = vpack.c.b16 %v917, %v909
    %v958 = vpack.c.b16 %v918, %v910
    %v959 = vpack.c.b16 %v919, %v911
    %v960 = vpack.c.b16 %v920, %v912
    %v961 = vpack.c.b16 %v921, %v913
    %v962 = vpack.c.b16 %v930, %v922
    %v963 = vpack.c.b16 %v931, %v923
    %v964 = vpack.c.b16 %v932, %v924
    %v965 = vpack.c.b16 %v933, %v925
    %v966 = vpack.c.b16 %v934, %v926
    %v967 = vpack.c.b16 %v935, %v927
    %v968 = vpack.c.b16 %v936, %v928
    %v969 = vpack.c.b16 %v937, %v929
    %vm1002 = vcmask 523264
    %v1004 = vsel %vm1002, %v767, 0
    %1006 = vmatprep.subr.bf16.mxu0 %v939
    %1007 = vmatpush1.bf16.msra.mxu0 %v938
    %1008 = vmatprep.subr.bf16.mxu0 %v947
    %1009 = vmatpush1.bf16.msra.mxu0 %v946
    %1010 = vmatprep.subr.bf16.mxu0 %v955
    %1011 = vmatpush1.bf16.msra.mxu0 %v954
    %1012 = vmatprep.subr.bf16.mxu0 %v963
    %1013 = vmatpush1.bf16.msra.mxu0 %v962
    %1014 = vmatprep.subr.bf16.mxu0 0
    %1015 = vmatpush1.bf16.msra.mxu0 0
    %1016 = vmatprep.subr.bf16.mxu0 0
    %1017 = vmatpush1.bf16.msra.mxu0 0
    %1018 = vmatprep.subr.bf16.mxu0 0
    %1019 = vmatpush1.bf16.msra.mxu0 0
    %1020 = vmatprep.subr.bf16.mxu0 0
    %1021 = vmatpush1.bf16.msra.mxu0 0
    %1022 = vmatprep.subr.bf16.mxu0 0
    %1023 = vmatpush1.bf16.msra.mxu0 0
    %1024 = vmatprep.subr.bf16.mxu0 0
    %1025 = vmatpush1.bf16.msra.mxu0 0
    %1026 = vmatprep.subr.bf16.mxu0 0
    %1027 = vmatpush1.bf16.msra.mxu0 0
    %1028 = vmatprep.subr.bf16.mxu0 0
    %1029 = vmatpush1.bf16.msra.mxu0 0
    %1030 = vmatprep.subr.bf16.mxu0 0
    %1031 = vmatpush1.bf16.msra.mxu0 0
    %1032 = vmatprep.subr.bf16.mxu0 0
    %1033 = vmatpush1.bf16.msra.mxu0 0
    %1034 = vmatprep.subr.bf16.mxu0 0
    %1035 = vmatpush1.bf16.msra.mxu0 0
    %1036 = vmatprep.subr.bf16.mxu0 0
    %1037 = vmatpush1.bf16.msra.mxu0 0
    %1038 = vmatprep.mubr.bf16.mxu0 0
    %1039 = vmatmul.mubr.bf16.gmra.mrb[0].mxu0 %v1004
    %v1040 = vpop.f32.mrb[0].mxu0
    %v1041 = vadd.f32 %v805, %v1040
    %v1042 = vpop.f32.mrb[0].mxu0
    %v1043 = vadd.f32 %v809, %v1042
    %v1044 = vpop.f32.mrb[0].mxu0
    %v1045 = vpop.f32.mrb[0].mxu0
    %1046 = vdwg.mxu0
    %1047 = vmatprep.subr.bf16.mxu0 %v941
    %1048 = vmatpush1.bf16.msra.mxu0 %v940
    %1049 = vmatprep.subr.bf16.mxu0 %v949
    %1050 = vmatpush1.bf16.msra.mxu0 %v948
    %1051 = vmatprep.subr.bf16.mxu0 %v957
    %1052 = vmatpush1.bf16.msra.mxu0 %v956
    %1053 = vmatprep.subr.bf16.mxu0 %v965
    %1054 = vmatpush1.bf16.msra.mxu0 %v964
    %1055 = vmatprep.subr.bf16.mxu0 0
    %1056 = vmatpush1.bf16.msra.mxu0 0
    %1057 = vmatprep.subr.bf16.mxu0 0
    %1058 = vmatpush1.bf16.msra.mxu0 0
    %1059 = vmatprep.subr.bf16.mxu0 0
    %1060 = vmatpush1.bf16.msra.mxu0 0
    %1061 = vmatprep.subr.bf16.mxu0 0
    %1062 = vmatpush1.bf16.msra.mxu0 0
    %1063 = vmatprep.subr.bf16.mxu0 0
    %1064 = vmatpush1.bf16.msra.mxu0 0
    %1065 = vmatprep.subr.bf16.mxu0 0
    %1066 = vmatpush1.bf16.msra.mxu0 0
    %1067 = vmatprep.subr.bf16.mxu0 0
    %1068 = vmatpush1.bf16.msra.mxu0 0
    %1069 = vmatprep.subr.bf16.mxu0 0
    %1070 = vmatpush1.bf16.msra.mxu0 0
    %1071 = vmatprep.subr.bf16.mxu0 0
    %1072 = vmatpush1.bf16.msra.mxu0 0
    %1073 = vmatprep.subr.bf16.mxu0 0
    %1074 = vmatpush1.bf16.msra.mxu0 0
    %1075 = vmatprep.subr.bf16.mxu0 0
    %1076 = vmatpush1.bf16.msra.mxu0 0
    %1077 = vmatprep.subr.bf16.mxu0 0
    %1078 = vmatpush1.bf16.msra.mxu0 0
    %1079 = vmatprep.mubr.bf16.mxu0 0
    %1080 = vmatmul.mubr.bf16.gmra.mrb[0].mxu0 %v1004
    %v1081 = vpop.f32.mrb[0].mxu0
    %v1082 = vadd.f32 %v813, %v1081
    %v1083 = vpop.f32.mrb[0].mxu0
    %v1084 = vadd.f32 %v817, %v1083
    %v1085 = vpop.f32.mrb[0].mxu0
    %v1086 = vpop.f32.mrb[0].mxu0
    %1087 = vdwg.mxu0
    %1088 = vmatprep.subr.bf16.mxu0 %v943
    %1089 = vmatpush1.bf16.msra.mxu0 %v942
    %1090 = vmatprep.subr.bf16.mxu0 %v951
    %1091 = vmatpush1.bf16.msra.mxu0 %v950
    %1092 = vmatprep.subr.bf16.mxu0 %v959
    %1093 = vmatpush1.bf16.msra.mxu0 %v958
    %1094 = vmatprep.subr.bf16.mxu0 %v967
    %1095 = vmatpush1.bf16.msra.mxu0 %v966
    %1096 = vmatprep.subr.bf16.mxu0 0
    %1097 = vmatpush1.bf16.msra.mxu0 0
    %1098 = vmatprep.subr.bf16.mxu0 0
    %1099 = vmatpush1.bf16.msra.mxu0 0
    %1100 = vmatprep.subr.bf16.mxu0 0
    %1101 = vmatpush1.bf16.msra.mxu0 0
    %1102 = vmatprep.subr.bf16.mxu0 0
    %1103 = vmatpush1.bf16.msra.mxu0 0
    %1104 = vmatprep.subr.bf16.mxu0 0
    %1105 = vmatpush1.bf16.msra.mxu0 0
    %1106 = vmatprep.subr.bf16.mxu0 0
    %1107 = vmatpush1.bf16.msra.mxu0 0
    %1108 = vmatprep.subr.bf16.mxu0 0
    %1109 = vmatpush1.bf16.msra.mxu0 0
    %1110 = vmatprep.subr.bf16.mxu0 0
    %1111 = vmatpush1.bf16.msra.mxu0 0
    %1112 = vmatprep.subr.bf16.mxu0 0
    %1113 = vmatpush1.bf16.msra.mxu0 0
    %1114 = vmatprep.subr.bf16.mxu0 0
    %1115 = vmatpush1.bf16.msra.mxu0 0
    %1116 = vmatprep.subr.bf16.mxu0 0
    %1117 = vmatpush1.bf16.msra.mxu0 0
    %1118 = vmatprep.subr.bf16.mxu0 0
    %1119 = vmatpush1.bf16.msra.mxu0 0
    %1120 = vmatprep.mubr.bf16.mxu0 0
    %1121 = vmatmul.mubr.bf16.gmra.mrb[0].mxu0 %v1004
    %v1122 = vpop.f32.mrb[0].mxu0
    %v1123 = vadd.f32 %v821, %v1122
    %v1124 = vpop.f32.mrb[0].mxu0
    %v1125 = vadd.f32 %v825, %v1124
    %v1126 = vpop.f32.mrb[0].mxu0
    %v1127 = vpop.f32.mrb[0].mxu0
    %1128 = vdwg.mxu0
    %1129 = vmatprep.subr.bf16.mxu0 %v945
    %1130 = vmatpush1.bf16.msra.mxu0 %v944
    %1131 = vmatprep.subr.bf16.mxu0 %v953
    %1132 = vmatpush1.bf16.msra.mxu0 %v952
    %1133 = vmatprep.subr.bf16.mxu0 %v961
    %1134 = vmatpush1.bf16.msra.mxu0 %v960
    %1135 = vmatprep.subr.bf16.mxu0 %v969
    %1136 = vmatpush1.bf16.msra.mxu0 %v968
    %1137 = vmatprep.subr.bf16.mxu0 0
    %1138 = vmatpush1.bf16.msra.mxu0 0
    %1139 = vmatprep.subr.bf16.mxu0 0
    %1140 = vmatpush1.bf16.msra.mxu0 0
    %1141 = vmatprep.subr.bf16.mxu0 0
    %1142 = vmatpush1.bf16.msra.mxu0 0
    %1143 = vmatprep.subr.bf16.mxu0 0
    %1144 = vmatpush1.bf16.msra.mxu0 0
    %1145 = vmatprep.subr.bf16.mxu0 0
    %1146 = vmatpush1.bf16.msra.mxu0 0
    %1147 = vmatprep.subr.bf16.mxu0 0
    %1148 = vmatpush1.bf16.msra.mxu0 0
    %1149 = vmatprep.subr.bf16.mxu0 0
    %1150 = vmatpush1.bf16.msra.mxu0 0
    %1151 = vmatprep.subr.bf16.mxu0 0
    %1152 = vmatpush1.bf16.msra.mxu0 0
    %1153 = vmatprep.subr.bf16.mxu0 0
    %1154 = vmatpush1.bf16.msra.mxu0 0
    %1155 = vmatprep.subr.bf16.mxu0 0
    %1156 = vmatpush1.bf16.msra.mxu0 0
    %1157 = vmatprep.subr.bf16.mxu0 0
    %1158 = vmatpush1.bf16.msra.mxu0 0
    %1159 = vmatprep.subr.bf16.mxu0 0
    %1160 = vmatpush1.bf16.msra.mxu0 0
    %1161 = vmatprep.mubr.bf16.mxu0 0
    %1162 = vmatmul.mubr.bf16.gmra.mrb[0].mxu0 %v1004
    %v1163 = vpop.f32.mrb[0].mxu0
    %v1164 = vadd.f32 %v829, %v1163
    %v1165 = vpop.f32.mrb[0].mxu0
    %v1166 = vadd.f32 %v833, %v1165
    %v1167 = vpop.f32.mrb[0].mxu0
    %v1168 = vpop.f32.mrb[0].mxu0
    %1169 = vdwg.mxu0
    %1170 = vst [vmem:[%s6] sm:$0xff] %v1041
    %1171 = vst [vmem:[%s6 + $0x8] sm:$0xff] %v1043
    %1172 = vst [vmem:[%s6 + $0x10] sm:$0xff] %v1082
    %1173 = vst [vmem:[%s6 + $0x18] sm:$0xff] %v1084
    %1174 = vst [vmem:[%s6 + $0x20] sm:$0xff] %v1123
    %1175 = vst [vmem:[%s6 + $0x28] sm:$0xff] %v1125
    %1176 = vst [vmem:[%s6 + $0x30] sm:$0xff] %v1164
    %1177 = vst [vmem:[%s6 + $0x38] sm:$0xff] %v1166
    %1178 = vst [vmem:[%s7] sm:$0xff] %v747
    %v1179 = vlaneseq
    %v1180 = vshrl.u32 %v1179, 7
    %s1181 = smul.u32 0, 8
    %v1182 = vstv %s1181
    %v1183 = vadd.s32 %v1180, %v1182
    %vm1184 = vcmp.lt.s32.totalorder %v1183, 2
    %v1185 = vsel %vm1184, 1, 0
    %v1186 = vcvt.s32.f32 %v1185
    %v1187 = vunpack.c.l.bf16 %v41
    %v1188 = vunpack.c.h.bf16 %v41
    %v1189 = vunpack.c.l.bf16 %v42
    %v1190 = vunpack.c.h.bf16 %v42
    %v1191 = vunpack.c.l.bf16 %v43
    %v1192 = vunpack.c.h.bf16 %v43
    %v1193 = vunpack.c.l.bf16 %v44
    %v1194 = vunpack.c.h.bf16 %v44
    %v1195 = vsub.f32 %v1041, %v1187
    %v1196 = vsub.f32 %v1043, %v1188
    %v1197 = vsub.f32 %v1082, %v1189
    %v1198 = vsub.f32 %v1084, %v1190
    %v1199 = vsub.f32 %v1123, %v1191
    %v1200 = vsub.f32 %v1125, %v1192
    %v1201 = vsub.f32 %v1164, %v1193
    %v1202 = vsub.f32 %v1166, %v1194
    %v1203 = vmul.f32 %v1195, %v1195
    %v1204 = vmul.f32 %v1196, %v1196
    %v1205 = vmul.f32 %v1197, %v1197
    %v1206 = vmul.f32 %v1198, %v1198
    %v1207 = vmul.f32 %v1199, %v1199
    %v1208 = vmul.f32 %v1200, %v1200
    %v1209 = vmul.f32 %v1201, %v1201
    %v1210 = vmul.f32 %v1202, %v1202
    %v1211 = vmul.f32 %v1203, %v1186
    %v1212 = vmul.f32 %v1204, %v1186
    %v1213 = vmul.f32 %v1205, %v1186
    %v1214 = vmul.f32 %v1206, %v1186
    %v1215 = vmul.f32 %v1207, %v1186
    %v1216 = vmul.f32 %v1208, %v1186
    %v1217 = vmul.f32 %v1209, %v1186
    %v1218 = vmul.f32 %v1210, %v1186
    %v1219 = vadd.f32 %v1211, %v1212
    %v1220 = vadd.f32 %v1219, %v1213
    %v1221 = vadd.f32 %v1220, %v1214
    %v1222 = vadd.f32 %v1221, %v1215
    %v1223 = vadd.f32 %v1222, %v1216
    %v1224 = vadd.f32 %v1223, %v1217
    %v1225 = vadd.f32 %v1224, %v1218
    %1226 = vadd.xlane.f32.xlu0 %v1225
    %v1227 = vpop.xlane.xlu0 %1226
    %v1228 = vrot.slane %v1227, 4
    %v1229 = vadd.f32 %v1227, %v1228
    %v1230 = vrot.slane %v1229, 2
    %v1231 = vadd.f32 %v1229, %v1230
    %v1232 = vrot.slane %v1231, 1
    %v1233 = vadd.f32 %v1231, %v1232
    %s1234 = vtos %v1233
    %v1235 = vadd.f32 %v747, 1.0
    %v1236 = vmul.f32 %v747, %v747
    %1238 = vrot.lane.b32.xlu0 %v1236, 64
    %v1239 = vpop.permute.xlu0 %1238
    %v1241 = vsub.f32 %v1235, %v1239
    %v1242 = vsub.f32 %v1241, %v755
    %1244 = vrot.lane.b32.xlu0 %v1242, 64
    %v1245 = vpop.permute.xlu0 %1244
    %v1247 = vsel %vm1002, %v1245, 0.0
    %1248 = vadd.xlane.f32.xlu0 %v1247
    %v1249 = vpop.xlane.xlu0 %1248
    %v1250 = vmul.f32 %v1249, %v1186
    %vm1251 = vcmask 7168
    %v1252 = vsel %vm1251, %v1250, 0.0
    %1253 = vadd.xlane.f32.xlu0 %v1252
    %v1254 = vpop.xlane.xlu0 %1253
    %v1255 = vrot.slane %v1254, 4
    %v1256 = vadd.f32 %v1254, %v1255
    %v1257 = vrot.slane %v1256, 2
    %v1258 = vadd.f32 %v1256, %v1257
    %v1259 = vrot.slane %v1258, 1
    %v1260 = vadd.f32 %v1258, %v1259
    %s1261 = vtos %v1260
    %v1262 = vlaneseq
    %v1263 = vand.u32 %v1262, 127
    %vm1264 = vcmp.eq.s32.totalorder %v1263, 0
    %v1265 = vstv %s1234
    %v1266 = vsel %vm1264, %v1265, 0.0
    %vm1267 = vcmp.eq.s32.totalorder %v1263, 1
    %v1268 = vstv %s1261
    %v1269 = vsel %vm1267, %v1268, 0.0
    %v1270 = vadd.f32 %v1266, %v1269
    %p1271 = scmp.eq.s32.totalorder 0, 0
    // Predicated region
    $region30: #{_forward_and_loss.1} parent=1 // pred_check
      %p1272 = pneg %p1271
    $region31: #{_forward_and_loss.1} parent=1 // pred_check_branch
      %1274 = sbr.rel (%p1272) target = $region33
    $region32: #{_forward_and_loss.1} parent=1 // pred_region
      %1275 = vst [vmem:[%s8] sm:$0xff] 0.0
    $region33: #{_forward_and_loss.1} parent=1 // pred_fallthru
      _
    %v1276 = vld [vmem:[%s8] sm:$0xff]
    %v1277 = vadd.f32 %v1276, %v1270
    %1278 = vst [vmem:[%s8] sm:$0xff] %v1277
    // Predicated region
    $region34: #{_forward_and_loss.1} parent=1 // pred_check
      _
    $region35: #{_forward_and_loss.1} parent=1 // pred_check_branch
      %1280 = sbr.rel (0) target = $region37
    $region36: #{_forward_and_loss.1} parent=1 // pred_region
      _
    $region37: #{_forward_and_loss.1} parent=1 // pred_fallthru
      _
    // Predicated region
    $region38: #{_forward_and_loss.1} parent=1 // pred_check
      _
    $region39: #{_forward_and_loss.1} parent=1 // pred_check_branch
      %1282 = sbr.rel (0) target = $region41
    $region40: #{_forward_and_loss.1} parent=1 // pred_region
      _
    $region41: #{_forward_and_loss.1} parent=1 // pred_fallthru
      _
    // Predicated region
    $region42: #{_forward_and_loss.1} parent=1 // pred_check
      _
    $region43: #{_forward_and_loss.1} parent=1 // pred_check_branch
      %1284 = sbr.rel (0) target = $region45
    $region44: #{_forward_and_loss.1} parent=1 // pred_region
      _
    $region45: #{_forward_and_loss.1} parent=1 // pred_fallthru
      _
    // Predicated region
    $region46: #{_forward_and_loss.1} parent=1 // pred_check
      _
    $region47: #{_forward_and_loss.1} parent=1 // pred_check_branch
      %1286 = sbr.rel (0) target = $region49
    $region48: #{_forward_and_loss.1} parent=1 // pred_region
      _
    $region49: #{_forward_and_loss.1} parent=1 // pred_fallthru
      _
    // Predicated region
    $region50: #{_forward_and_loss.1} parent=1 // pred_check
      _
    $region51: #{_forward_and_loss.1} parent=1 // pred_check_branch
      %1288 = sbr.rel (0) target = $region53
    $region52: #{_forward_and_loss.1} parent=1 // pred_region
      _
    $region53: #{_forward_and_loss.1} parent=1 // pred_fallthru
      _
    // Predicated region
    $region54: #{_forward_and_loss.1} parent=1 // pred_check
      _
    $region55: #{_forward_and_loss.1} parent=1 // pred_check_branch
      %1290 = sbr.rel (0) target = $region57
    $region56: #{_forward_and_loss.1} parent=1 // pred_region
      _
    $region57: #{_forward_and_loss.1} parent=1 // pred_fallthru
      _
    %1291 = vsyncpa [#allocation3], 1

</llo_original>
